<compile_context>
chip_gen: v6e
topology: v6e:2x2x1
jax: 0.10.0
libtpu: 0.0.40
codegen_flags: <defaults>
</compile_context>

<pallas_src>
import functools
import itertools

import numpy as np
import jax
import jax.numpy as jnp
from jax.experimental import pallas as pl
from jax.experimental.pallas import tpu as pltpu

COST_CLASS_W = 1.0   # HungarianMatcher cost weights (class prob / trace L1)
COST_TRACE_W = 1.0


# ----------------------------- Pallas kernels -------------------------------

def _matcher_cost_kernel(logits_ref, traces_ref, tgt_tr_t_ref, tgt_cls_ref, cost_ref):
    """Per-image matching cost (grid axis = batch, "parallel").

    cost[q, t] = L1(pred_trace[q], tgt_trace[t]) - softmax(logits[q])[tgt_cls[t]]

    Targets are padded along T to a multiple of 128 (lane-dense output); padded
    columns carry class 0 / zero traces and are sliced off on the host.
    """
    Q, C = logits_ref.shape[1], logits_ref.shape[2]
    P = traces_ref.shape[2]
    T = tgt_cls_ref.shape[2]

    logits = logits_ref[0]        # (Q, C)
    traces = traces_ref[0]        # (Q, P)
    tgt_t = tgt_tr_t_ref[0]       # (P, T)  targets pre-transposed -> T on lanes
    tcls = tgt_cls_ref[0, 0]      # (T,) int32 padded target classes

    # exact softmax (no approx reciprocal: keeps near-tie assignments identical
    # to the PyTorch matcher)
    mx = jnp.max(logits, axis=-1, keepdims=True)
    e = jnp.exp(logits - mx)
    probs = e / jnp.sum(e, axis=-1, keepdims=True)            # (Q, C)

    # class cost as a masked VPU sum over the (few) classes: no tiny MXU dot.
    cost_class = jnp.zeros((Q, T), jnp.float32)
    for c in range(C):
        sel = (tcls == c).astype(jnp.float32)                 # (T,)
        cost_class = cost_class - probs[:, c:c + 1] * sel[None, :]

    # L1 cdist accumulated over P: only the (Q, T) accumulator stays live
    # (no (Q, P, T) intermediate, no cross-sublane reduce).
    cost_trace = jnp.zeros((Q, T), jnp.float32)
    for p in range(P):
        cost_trace = cost_trace + jnp.abs(traces[:, p:p + 1] - tgt_t[p][None, :])

    cost_ref[0] = COST_TRACE_W * cost_trace + COST_CLASS_W * cost_class


def _fused_loss_kernel(src_idx_ref, tlen_ref, logits_ref, tcls_ref, pred_ref,
                       tgt_ref, out_ref, src_buf, *, eos_coef):
    """Weighted CE (num/den) + cardinality + matched-trace losses, one call.

    Outputs a single (8,) SMEM vector:
      [ce_num, ce_den, card_err, d_trace, d_end, d_spacing, 0, 0]
    """
    logits = logits_ref[...]                          # (B, Q, C)
    tcls = tcls_ref[...]                              # (B, Q) int32 matched classes (0 = no-object)
    B, Q, C = logits.shape
    M, P = tgt_ref.shape

    # --- weighted cross-entropy; one-hot + empty_weight built in-kernel ---
    m = jnp.max(logits, axis=-1, keepdims=True)
    lse = m + jnp.log(jnp.sum(jnp.exp(logits - m), axis=-1, keepdims=True))
    logp = logits - lse
    onehot = (jax.lax.broadcasted_iota(jnp.int32, (B, Q, C), 2)
              == tcls[:, :, None]).astype(jnp.float32)
    nll = -jnp.sum(onehot * logp, axis=-1)            # (B, Q)
    w = jnp.where(tcls == 0, eos_coef, 1.0)           # empty_weight lookup
    out_ref[0] = jnp.sum(w * nll)                     # F.cross_entropy numerator
    out_ref[1] = jnp.sum(w)                           # ... and denominator

    # --- cardinality: argmax(-1) > 0, via lane-in-place masked max (no 1: slice) ---
    col = jax.lax.broadcasted_iota(jnp.int32, (B, Q, C), 2)
    max_rest = jnp.max(jnp.where(col >= 1, logits, -1e30), axis=-1)   # (B, Q)
    l0 = jnp.sum(jnp.where(col == 0, logits, 0.0), axis=-1)           # (B, Q)
    nonq = (max_rest > l0).astype(jnp.float32)                        # (B, Q)
    err = jnp.float32(0.0)
    for b in range(B):
        tl = tlen_ref[b].astype(jnp.float32)          # SMEM scalar read (free)
        err = err + jnp.abs(jnp.sum(nonq[b]) - tl)
    out_ref[2] = err / B

    # --- in-kernel gather of the matched prediction rows (no separate jnp.take) ---
    for mm in range(M):
        row = pred_ref[src_idx_ref[mm]]               # (1, P), dynamic leading-dim index
        src_buf[mm, :] = row[0]
    src = src_buf[...]                                # (M, P) interleaved (x0,y0,x1,y1,...)
    tgt = tgt_ref[...]
    adiff = jnp.abs(src - tgt)
    out_ref[3] = jnp.sum(adiff)                                       # trace_distance

    lane = jax.lax.broadcasted_iota(jnp.int32, (M, P), 1)
    end_mask = jnp.logical_or(lane < 2, lane >= P - 2)
    out_ref[4] = jnp.sum(jnp.where(end_mask, adiff, 0.0))             # end-coords L1

    # point_spacing_std: unbiased std (like torch.std) of consecutive segment lengths
    d = src[:, 2:] - src[:, :-2]                      # (M, P-2): [dx0, dy0, dx1, dy1, ...]
    sq = d * d
    pair = sq[:, :-1] + sq[:, 1:]                     # even cols hold dx_k^2 + dy_k^2
    seg = jnp.sqrt(pair)                              # odd cols are don't-care (masked below)
    nseg = (P - 2) // 2                               # NPTS - 1 segments
    lane2 = jax.lax.broadcasted_iota(jnp.int32, pair.shape, 1)
    mask = (lane2 & 1) == 0
    segm = jnp.where(mask, seg, 0.0)
    mean = jnp.sum(segm, axis=-1, keepdims=True) / nseg
    dev = jnp.where(mask, seg - mean, 0.0)
    var = jnp.sum(dev * dev, axis=-1) / (nseg - 1)    # requires NPTS >= 3 (host-asserted)
    out_ref[5] = jnp.sum(jnp.sqrt(var))

    out_ref[6] = jnp.float32(0.0)
    out_ref[7] = jnp.float32(0.0)


# ------------------------------ wrappers -------------------------------------

def matcher_cost(pred_logits, pred_traces, tgt_traces_t, tgt_cls_pad):
    B, Q, C = pred_logits.shape
    P = pred_traces.shape[-1]
    T = tgt_cls_pad.shape[-1]
    return pl.pallas_call(
        _matcher_cost_kernel,
        out_shape=jax.ShapeDtypeStruct((B, Q, T), jnp.float32),
        grid=(B,),                                    # per-image work, sharded across cores
        in_specs=[
            pl.BlockSpec((1, Q, C), lambda b: (b, 0, 0)),
            pl.BlockSpec((1, Q, P), lambda b: (b, 0, 0)),
            pl.BlockSpec((1, P, T), lambda b: (b, 0, 0)),
            pl.BlockSpec((1, 1, T), lambda b: (b, 0, 0)),
        ],
        out_specs=pl.BlockSpec((1, Q, T), lambda b: (b, 0, 0)),
        compiler_params=pltpu.CompilerParams(
            dimension_semantics=("parallel",),
            vmem_limit_bytes=32 * 1024 * 1024),       # lifts v5e's 16 MiB scoped default
    )(pred_logits, pred_traces, tgt_traces_t, tgt_cls_pad)


def fused_losses(pred_logits, target_classes, pred_traces_flat3, tgt_matched,
                 src_flat_idx, tgt_len, eos_coef):
    B, Q, C = pred_logits.shape
    M, P = tgt_matched.shape
    BQ = pred_traces_flat3.shape[0]
    kernel = functools.partial(_fused_loss_kernel, eos_coef=float(eos_coef))
    out = pl.pallas_call(
        kernel,
        out_shape=jax.ShapeDtypeStruct((8,), jnp.float32),
        grid_spec=pltpu.PrefetchScalarGridSpec(
            num_scalar_prefetch=2,                    # src_flat_idx, tgt_len -> SMEM
            grid=(1,),
            in_specs=[
                pl.BlockSpec((B, Q, C), lambda i, idx, tl: (0, 0, 0)),
                pl.BlockSpec((B, Q), lambda i, idx, tl: (0, 0)),
                pl.BlockSpec((BQ, 1, P), lambda i, idx, tl: (0, 0, 0)),
                pl.BlockSpec((M, P), lambda i, idx, tl: (0, 0)),
            ],
            out_specs=pl.BlockSpec(memory_space=pltpu.MemorySpace.SMEM),
            scratch_shapes=[pltpu.VMEM((M, P), jnp.float32)],
        ),
        compiler_params=pltpu.CompilerParams(dimension_semantics=("arbitrary",)),
    )(src_flat_idx, tgt_len, pred_logits, target_classes, pred_traces_flat3, tgt_matched)
    return out


# ------------------------------ Criterion ------------------------------------

def criterion_forward(pred_logits, pred_traces, tgt_traces_list, tgt_classes_list,
                      num_classes, eos_coef=0.1):
    B, Q, C = pred_logits.shape
    assert C == num_classes + 1
    P = pred_traces.shape[-1]
    assert P >= 6, "point_spacing_std needs NPTS >= 3 (unbiased std over >= 2 segments)"
    lens = [int(t.shape[0]) for t in tgt_traces_list]
    Tmax = max(lens)
    T_pad = 128 * pl.cdiv(Tmax, 128)                  # lane-dense cost output

    # --- pad ragged targets once on the host (one transfer per tensor) ---
    tr_np = [np.asarray(t, np.float32) for t in tgt_traces_list]
    cls_np = [np.asarray(c, np.int32) for c in tgt_classes_list]
    tgt_tr_t_np = np.zeros((B, P, T_pad), np.float32)   # transposed: T on lanes in-kernel
    tgt_cls_np = np.zeros((B, 1, T_pad), np.int32)
    for b in range(B):
        tgt_tr_t_np[b, :, :lens[b]] = tr_np[b].T
        tgt_cls_np[b, 0, :lens[b]] = cls_np[b]

    # --- 1) Hungarian matching: cost matrix on TPU, assignment on host ---
    cost = matcher_cost(pred_logits, pred_traces,
                        jnp.asarray(tgt_tr_t_np), jnp.asarray(tgt_cls_np))
    # slice off the lane padding ON DEVICE before the single required host sync
    cost_np = np.asarray(jax.device_get(cost[:, :, :Tmax]))
    # TODO(synk): Hungarian assignment (scipy.optimize.linear_sum_assignment) has no clean
    # Pallas equivalent; solved exactly on host by brute force over permutations (toy sizes).
    indices = []
    for b in range(B):
        n = lens[b]
        c = cost_np[b, :, :n]
        best, best_perm = None, None
        for perm in itertools.permutations(range(Q), n):
            s = float(c[list(perm), list(range(n))].sum())
            if best is None or s < best:
                best, best_perm = s, perm
        src = np.asarray(best_perm, np.int64)
        tgt = np.arange(n, dtype=np.int64)
        order = np.argsort(src)
        indices.append((src[order], tgt[order]))

    num_boxes = float(max(sum(lens), 1))

    # --- host-side glue for the fused loss kernel (flat indices, gather in-kernel) ---
    target_classes_np = np.zeros((B, Q), np.int32)
    src_flat_idx = []
    tgt_rows = []
    for b, (src_idx, tgt_idx) in enumerate(indices):
        target_classes_np[b, src_idx] = cls_np[b][tgt_idx]
        src_flat_idx.append(b * Q + src_idx)
        tgt_rows.append(tr_np[b][tgt_idx])
    src_flat_idx = np.concatenate(src_flat_idx).astype(np.int32)
    tgt_matched_np = np.concatenate(tgt_rows, axis=0).astype(np.float32)   # (M, P)
    tgt_len_np = np.asarray(lens, np.int32)                                # (B,)
    M = int(src_flat_idx.shape[0])
    assert M > 0, "fused loss kernel expects at least one matched target"

    # free metadata reshape; the row gather itself happens inside the fused kernel
    pred_flat3 = pred_traces.reshape(B * Q, 1, P)

    # --- 2+3) classification + cardinality + matched-trace losses (single fused call) ---
    out = fused_losses(pred_logits, jnp.asarray(target_classes_np), pred_flat3,
                       jnp.asarray(tgt_matched_np), jnp.asarray(src_flat_idx),
                       jnp.asarray(tgt_len_np), eos_coef)
    num, den, card_err, d_trace, d_end, d_spacing = (
        out[0], out[1], out[2], out[3], out[4], out[5])

    return {
        'loss_class': num / den,
        'loss_trace_distance': d_trace / num_boxes,
        'loss_point_spacing': d_spacing / num_boxes,
        'loss_end_coords': d_end / num_boxes / 4.0,
        'cardinality_error': card_err,
    }


# --------------------------------- main ---------------------------------------

if __name__ == "__main__":
    key = jax.random.PRNGKey(0)
    B, Q, NUM_CLASSES, NPTS = 2, 8, 2, 5
    C, P = NUM_CLASSES + 1, 2 * NPTS
    k1, k2, k3, k4 = jax.random.split(key, 4)

    pred_logits = jax.random.normal(k1, (B, Q, C), jnp.float32)
    pred_traces = jax.random.uniform(k2, (B, Q, P), dtype=jnp.float32)

    lens = [3, 2]
    tkeys = jax.random.split(k3, B)
    ckeys = jax.random.split(k4, B)
    tgt_traces_list = [jax.random.uniform(tkeys[b], (lens[b], P), dtype=jnp.float32)
                       for b in range(B)]
    tgt_classes_list = [jax.random.randint(ckeys[b], (lens[b],), 1, NUM_CLASSES + 1)
                        for b in range(B)]

    losses = criterion_forward(pred_logits, pred_traces,
                               tgt_traces_list, tgt_classes_list,
                               num_classes=NUM_CLASSES, eos_coef=0.1)
    for v in losses.values():
        jax.block_until_ready(v)
    print("KERNEL_OK")
</pallas_src>

<mosaic_0001>
module attributes {stable_mosaic.version = 11 : i64} {
  func.func @_matcher_cost_kernel(%arg0: i32, %arg1: memref<1x8x3xf32, #tpu.memory_space<vmem>>, %arg2: memref<1x8x10xf32, #tpu.memory_space<vmem>>, %arg3: memref<1x10x128xf32, #tpu.memory_space<vmem>>, %arg4: memref<1x1x128xi32, #tpu.memory_space<vmem>>, %arg5: memref<1x8x128xf32, #tpu.memory_space<vmem>>) attributes {dimension_semantics = [#tpu.dimension_semantics<parallel>], iteration_bounds = array<i64: 2>, scalar_prefetch = 0 : i64, scratch_operands = 0 : i64, tpu.core_type = #tpu.core_type<tc>, window_params = [{transform_indices = @transform_0, window_bounds = array<i64: 1, 8, 3>}, {transform_indices = @transform_1, window_bounds = array<i64: 1, 8, 10>}, {transform_indices = @transform_2, window_bounds = array<i64: 1, 10, 128>}, {transform_indices = @transform_3, window_bounds = array<i64: 1, 1, 128>}, {transform_indices = @transform_4, window_bounds = array<i64: 1, 8, 128>}]} {
    %c0 = arith.constant 0 : index
    %c0_0 = arith.constant 0 : index
    %c0_1 = arith.constant 0 : index
    %0 = vector.load %arg1[%c0, %c0_0, %c0_1] : memref<1x8x3xf32, #tpu.memory_space<vmem>>, vector<1x8x3xf32>
    %1 = vector.shape_cast %0 : vector<1x8x3xf32> to vector<8x3xf32>
    %c0_2 = arith.constant 0 : index
    %c0_3 = arith.constant 0 : index
    %c0_4 = arith.constant 0 : index
    %2 = vector.load %arg2[%c0_2, %c0_3, %c0_4] : memref<1x8x10xf32, #tpu.memory_space<vmem>>, vector<1x8x10xf32>
    %3 = vector.shape_cast %2 : vector<1x8x10xf32> to vector<8x10xf32>
    %c0_5 = arith.constant 0 : index
    %c0_6 = arith.constant 0 : index
    %c0_7 = arith.constant 0 : index
    %4 = vector.load %arg3[%c0_5, %c0_6, %c0_7] : memref<1x10x128xf32, #tpu.memory_space<vmem>>, vector<1x10x128xf32>
    %5 = vector.shape_cast %4 : vector<1x10x128xf32> to vector<10x128xf32>
    %c0_8 = arith.constant 0 : index
    %c0_9 = arith.constant 0 : index
    %c0_10 = arith.constant 0 : index
    %6 = vector.load %arg4[%c0_8, %c0_9, %c0_10] : memref<1x1x128xi32, #tpu.memory_space<vmem>>, vector<1x1x128xi32>
    %7 = vector.shape_cast %6 : vector<1x1x128xi32> to vector<128xi32>
    %cst = arith.constant dense<0xFF800000> : vector<8xf32>
    %8 = vector.multi_reduction <maximumf>, %1, %cst [1] : vector<8x3xf32> to vector<8xf32>
    %9 = vector.shape_cast %8 : vector<8xf32> to vector<8x1xf32>
    %10 = vector.broadcast %9 : vector<8x1xf32> to vector<8x3xf32>
    %11 = arith.subf %1, %10 : vector<8x3xf32>
    %12 = math.exp %11 : vector<8x3xf32>
    %cst_11 = arith.constant dense<0.000000e+00> : vector<8xf32>
    %13 = vector.multi_reduction <add>, %12, %cst_11 [1] : vector<8x3xf32> to vector<8xf32>
    %14 = vector.shape_cast %13 : vector<8xf32> to vector<8x1xf32>
    %15 = vector.broadcast %14 : vector<8x1xf32> to vector<8x3xf32>
    %16 = arith.divf %12, %15 : vector<8x3xf32>
    %cst_12 = arith.constant 0.000000e+00 : f32
    %17 = vector.broadcast %cst_12 : f32 to vector<8x128xf32>
    %c0_i32 = arith.constant 0 : i32
    %18 = vector.broadcast %c0_i32 : i32 to vector<128xi32>
    %19 = arith.cmpi eq, %7, %18 : vector<128xi32>
    %20 = arith.extui %19 : vector<128xi1> to vector<128xi32>
    %21 = arith.sitofp %20 : vector<128xi32> to vector<128xf32>
    %22 = vector.extract_strided_slice %16 {offsets = [0, 0], sizes = [8, 1], strides = [1, 1]} : vector<8x3xf32> to vector<8x1xf32>
    %23 = vector.shape_cast %21 : vector<128xf32> to vector<1x128xf32>
    %24 = vector.broadcast %22 : vector<8x1xf32> to vector<8x128xf32>
    %25 = vector.broadcast %23 : vector<1x128xf32> to vector<8x128xf32>
    %26 = arith.mulf %24, %25 : vector<8x128xf32>
    %27 = arith.subf %17, %26 : vector<8x128xf32>
    %c1_i32 = arith.constant 1 : i32
    %28 = vector.broadcast %c1_i32 : i32 to vector<128xi32>
    %29 = arith.cmpi eq, %7, %28 : vector<128xi32>
    %30 = arith.extui %29 : vector<128xi1> to vector<128xi32>
    %31 = arith.sitofp %30 : vector<128xi32> to vector<128xf32>
    %32 = vector.extract_strided_slice %16 {offsets = [0, 1], sizes = [8, 1], strides = [1, 1]} : vector<8x3xf32> to vector<8x1xf32>
    %33 = vector.shape_cast %31 : vector<128xf32> to vector<1x128xf32>
    %34 = vector.broadcast %32 : vector<8x1xf32> to vector<8x128xf32>
    %35 = vector.broadcast %33 : vector<1x128xf32> to vector<8x128xf32>
    %36 = arith.mulf %34, %35 : vector<8x128xf32>
    %37 = arith.subf %27, %36 : vector<8x128xf32>
    %c2_i32 = arith.constant 2 : i32
    %38 = vector.broadcast %c2_i32 : i32 to vector<128xi32>
    %39 = arith.cmpi eq, %7, %38 : vector<128xi32>
    %40 = arith.extui %39 : vector<128xi1> to vector<128xi32>
    %41 = arith.sitofp %40 : vector<128xi32> to vector<128xf32>
    %42 = vector.extract_strided_slice %16 {offsets = [0, 2], sizes = [8, 1], strides = [1, 1]} : vector<8x3xf32> to vector<8x1xf32>
    %43 = vector.shape_cast %41 : vector<128xf32> to vector<1x128xf32>
    %44 = vector.broadcast %42 : vector<8x1xf32> to vector<8x128xf32>
    %45 = vector.broadcast %43 : vector<1x128xf32> to vector<8x128xf32>
    %46 = arith.mulf %44, %45 : vector<8x128xf32>
    %47 = arith.subf %37, %46 : vector<8x128xf32>
    %cst_13 = arith.constant 0.000000e+00 : f32
    %48 = vector.broadcast %cst_13 : f32 to vector<8x128xf32>
    %49 = vector.extract_strided_slice %3 {offsets = [0, 0], sizes = [8, 1], strides = [1, 1]} : vector<8x10xf32> to vector<8x1xf32>
    %50 = vector.extract_strided_slice %5 {offsets = [0, 0], sizes = [1, 128], strides = [1, 1]} : vector<10x128xf32> to vector<1x128xf32>
    %51 = vector.shape_cast %50 : vector<1x128xf32> to vector<128xf32>
    %52 = vector.shape_cast %51 : vector<128xf32> to vector<1x128xf32>
    %53 = vector.broadcast %49 : vector<8x1xf32> to vector<8x128xf32>
    %54 = vector.broadcast %52 : vector<1x128xf32> to vector<8x128xf32>
    %55 = arith.subf %53, %54 : vector<8x128xf32>
    %56 = math.absf %55 : vector<8x128xf32>
    %57 = arith.addf %48, %56 : vector<8x128xf32>
    %58 = vector.extract_strided_slice %3 {offsets = [0, 1], sizes = [8, 1], strides = [1, 1]} : vector<8x10xf32> to vector<8x1xf32>
    %59 = vector.extract_strided_slice %5 {offsets = [1, 0], sizes = [1, 128], strides = [1, 1]} : vector<10x128xf32> to vector<1x128xf32>
    %60 = vector.shape_cast %59 : vector<1x128xf32> to vector<128xf32>
    %61 = vector.shape_cast %60 : vector<128xf32> to vector<1x128xf32>
    %62 = vector.broadcast %58 : vector<8x1xf32> to vector<8x128xf32>
    %63 = vector.broadcast %61 : vector<1x128xf32> to vector<8x128xf32>
    %64 = arith.subf %62, %63 : vector<8x128xf32>
    %65 = math.absf %64 : vector<8x128xf32>
    %66 = arith.addf %57, %65 : vector<8x128xf32>
    %67 = vector.extract_strided_slice %3 {offsets = [0, 2], sizes = [8, 1], strides = [1, 1]} : vector<8x10xf32> to vector<8x1xf32>
    %68 = vector.extract_strided_slice %5 {offsets = [2, 0], sizes = [1, 128], strides = [1, 1]} : vector<10x128xf32> to vector<1x128xf32>
    %69 = vector.shape_cast %68 : vector<1x128xf32> to vector<128xf32>
    %70 = vector.shape_cast %69 : vector<128xf32> to vector<1x128xf32>
    %71 = vector.broadcast %67 : vector<8x1xf32> to vector<8x128xf32>
    %72 = vector.broadcast %70 : vector<1x128xf32> to vector<8x128xf32>
    %73 = arith.subf %71, %72 : vector<8x128xf32>
    %74 = math.absf %73 : vector<8x128xf32>
    %75 = arith.addf %66, %74 : vector<8x128xf32>
    %76 = vector.extract_strided_slice %3 {offsets = [0, 3], sizes = [8, 1], strides = [1, 1]} : vector<8x10xf32> to vector<8x1xf32>
    %77 = vector.extract_strided_slice %5 {offsets = [3, 0], sizes = [1, 128], strides = [1, 1]} : vector<10x128xf32> to vector<1x128xf32>
    %78 = vector.shape_cast %77 : vector<1x128xf32> to vector<128xf32>
    %79 = vector.shape_cast %78 : vector<128xf32> to vector<1x128xf32>
    %80 = vector.broadcast %76 : vector<8x1xf32> to vector<8x128xf32>
    %81 = vector.broadcast %79 : vector<1x128xf32> to vector<8x128xf32>
    %82 = arith.subf %80, %81 : vector<8x128xf32>
    %83 = math.absf %82 : vector<8x128xf32>
    %84 = arith.addf %75, %83 : vector<8x128xf32>
    %85 = vector.extract_strided_slice %3 {offsets = [0, 4], sizes = [8, 1], strides = [1, 1]} : vector<8x10xf32> to vector<8x1xf32>
    %86 = vector.extract_strided_slice %5 {offsets = [4, 0], sizes = [1, 128], strides = [1, 1]} : vector<10x128xf32> to vector<1x128xf32>
    %87 = vector.shape_cast %86 : vector<1x128xf32> to vector<128xf32>
    %88 = vector.shape_cast %87 : vector<128xf32> to vector<1x128xf32>
    %89 = vector.broadcast %85 : vector<8x1xf32> to vector<8x128xf32>
    %90 = vector.broadcast %88 : vector<1x128xf32> to vector<8x128xf32>
    %91 = arith.subf %89, %90 : vector<8x128xf32>
    %92 = math.absf %91 : vector<8x128xf32>
    %93 = arith.addf %84, %92 : vector<8x128xf32>
    %94 = vector.extract_strided_slice %3 {offsets = [0, 5], sizes = [8, 1], strides = [1, 1]} : vector<8x10xf32> to vector<8x1xf32>
    %95 = vector.extract_strided_slice %5 {offsets = [5, 0], sizes = [1, 128], strides = [1, 1]} : vector<10x128xf32> to vector<1x128xf32>
    %96 = vector.shape_cast %95 : vector<1x128xf32> to vector<128xf32>
    %97 = vector.shape_cast %96 : vector<128xf32> to vector<1x128xf32>
    %98 = vector.broadcast %94 : vector<8x1xf32> to vector<8x128xf32>
    %99 = vector.broadcast %97 : vector<1x128xf32> to vector<8x128xf32>
    %100 = arith.subf %98, %99 : vector<8x128xf32>
    %101 = math.absf %100 : vector<8x128xf32>
    %102 = arith.addf %93, %101 : vector<8x128xf32>
    %103 = vector.extract_strided_slice %3 {offsets = [0, 6], sizes = [8, 1], strides = [1, 1]} : vector<8x10xf32> to vector<8x1xf32>
    %104 = vector.extract_strided_slice %5 {offsets = [6, 0], sizes = [1, 128], strides = [1, 1]} : vector<10x128xf32> to vector<1x128xf32>
    %105 = vector.shape_cast %104 : vector<1x128xf32> to vector<128xf32>
    %106 = vector.shape_cast %105 : vector<128xf32> to vector<1x128xf32>
    %107 = vector.broadcast %103 : vector<8x1xf32> to vector<8x128xf32>
    %108 = vector.broadcast %106 : vector<1x128xf32> to vector<8x128xf32>
    %109 = arith.subf %107, %108 : vector<8x128xf32>
    %110 = math.absf %109 : vector<8x128xf32>
    %111 = arith.addf %102, %110 : vector<8x128xf32>
    %112 = vector.extract_strided_slice %3 {offsets = [0, 7], sizes = [8, 1], strides = [1, 1]} : vector<8x10xf32> to vector<8x1xf32>
    %113 = vector.extract_strided_slice %5 {offsets = [7, 0], sizes = [1, 128], strides = [1, 1]} : vector<10x128xf32> to vector<1x128xf32>
    %114 = vector.shape_cast %113 : vector<1x128xf32> to vector<128xf32>
    %115 = vector.shape_cast %114 : vector<128xf32> to vector<1x128xf32>
    %116 = vector.broadcast %112 : vector<8x1xf32> to vector<8x128xf32>
    %117 = vector.broadcast %115 : vector<1x128xf32> to vector<8x128xf32>
    %118 = arith.subf %116, %117 : vector<8x128xf32>
    %119 = math.absf %118 : vector<8x128xf32>
    %120 = arith.addf %111, %119 : vector<8x128xf32>
    %121 = vector.extract_strided_slice %3 {offsets = [0, 8], sizes = [8, 1], strides = [1, 1]} : vector<8x10xf32> to vector<8x1xf32>
    %122 = vector.extract_strided_slice %5 {offsets = [8, 0], sizes = [1, 128], strides = [1, 1]} : vector<10x128xf32> to vector<1x128xf32>
    %123 = vector.shape_cast %122 : vector<1x128xf32> to vector<128xf32>
    %124 = vector.shape_cast %123 : vector<128xf32> to vector<1x128xf32>
    %125 = vector.broadcast %121 : vector<8x1xf32> to vector<8x128xf32>
    %126 = vector.broadcast %124 : vector<1x128xf32> to vector<8x128xf32>
    %127 = arith.subf %125, %126 : vector<8x128xf32>
    %128 = math.absf %127 : vector<8x128xf32>
    %129 = arith.addf %120, %128 : vector<8x128xf32>
    %130 = vector.extract_strided_slice %3 {offsets = [0, 9], sizes = [8, 1], strides = [1, 1]} : vector<8x10xf32> to vector<8x1xf32>
    %131 = vector.extract_strided_slice %5 {offsets = [9, 0], sizes = [1, 128], strides = [1, 1]} : vector<10x128xf32> to vector<1x128xf32>
    %132 = vector.shape_cast %131 : vector<1x128xf32> to vector<128xf32>
    %133 = vector.shape_cast %132 : vector<128xf32> to vector<1x128xf32>
    %134 = vector.broadcast %130 : vector<8x1xf32> to vector<8x128xf32>
    %135 = vector.broadcast %133 : vector<1x128xf32> to vector<8x128xf32>
    %136 = arith.subf %134, %135 : vector<8x128xf32>
    %137 = math.absf %136 : vector<8x128xf32>
    %138 = arith.addf %129, %137 : vector<8x128xf32>
    %cst_14 = arith.constant 1.000000e+00 : f32
    %139 = vector.broadcast %cst_14 : f32 to vector<8x128xf32>
    %140 = arith.mulf %139, %138 : vector<8x128xf32>
    %cst_15 = arith.constant 1.000000e+00 : f32
    %141 = vector.broadcast %cst_15 : f32 to vector<8x128xf32>
    %142 = arith.mulf %141, %47 : vector<8x128xf32>
    %143 = arith.addf %140, %142 : vector<8x128xf32>
    %c0_16 = arith.constant 0 : index
    %c0_17 = arith.constant 0 : index
    %c0_18 = arith.constant 0 : index
    %144 = vector.load %arg5[%c0_16, %c0_17, %c0_18] : memref<1x8x128xf32, #tpu.memory_space<vmem>>, vector<1x8x128xf32>
    %145 = vector.shape_cast %144 : vector<1x8x128xf32> to vector<8x128xf32>
    %146 = vector.shape_cast %143 : vector<8x128xf32> to vector<1x8x128xf32>
    tpu.vector_store %arg5[%c0_16, %c0_17, %c0_18], %146 {strides = array<i32>} : memref<1x8x128xf32, #tpu.memory_space<vmem>>, vector<1x8x128xf32>,
    return
  }
  func.func @transform_0(%arg0: i32) -> (i32, i32, i32) {
    %c0_i32 = arith.constant 0 : i32
    %c0_i32_0 = arith.constant 0 : i32
    %c0_i32_1 = arith.constant 0 : i32
    return %arg0, %c0_i32, %c0_i32_0 : i32, i32, i32
  }
  func.func @transform_1(%arg0: i32) -> (i32, i32, i32) {
    %c0_i32 = arith.constant 0 : i32
    %c0_i32_0 = arith.constant 0 : i32
    %c0_i32_1 = arith.constant 0 : i32
    return %arg0, %c0_i32, %c0_i32_0 : i32, i32, i32
  }
  func.func @transform_2(%arg0: i32) -> (i32, i32, i32) {
    %c0_i32 = arith.constant 0 : i32
    %c0_i32_0 = arith.constant 0 : i32
    %c0_i32_1 = arith.constant 0 : i32
    return %arg0, %c0_i32, %c0_i32_0 : i32, i32, i32
  }
  func.func @transform_3(%arg0: i32) -> (i32, i32, i32) {
    %c0_i32 = arith.constant 0 : i32
    %c0_i32_0 = arith.constant 0 : i32
    %c0_i32_1 = arith.constant 0 : i32
    return %arg0, %c0_i32, %c0_i32_0 : i32, i32, i32
  }
  func.func @transform_4(%arg0: i32) -> (i32, i32, i32) {
    %c0_i32 = arith.constant 0 : i32
    %c0_i32_0 = arith.constant 0 : i32
    %c0_i32_1 = arith.constant 0 : i32
    return %arg0, %c0_i32, %c0_i32_0 : i32, i32, i32
  }
}

</mosaic_0001>

<llo_original>
// kernel: tpu_custom_call.1
$region0: #{tpu_custom_call.1}
  #allocation0 [shape = 'u32[]', space=smem, size = 0x4, offset = 0x4, fixed_abs, tag = 'smem constant byte address 0x4 - core index']
  #allocation1 [shape = 'u32[144,128]{1,0:T(1,128)}', space=vmem, size = 0x12000, scoped, tag = 'internal scratch']
  %s0 = inlined_call_operand.vmem [shape: f32[2,8,3], index: 0, kind: input, shape index: {}]
  %s1 = inlined_call_operand.vmem [shape: f32[2,8,10], index: 1, kind: input, shape index: {}]
  %s2 = inlined_call_operand.vmem [shape: f32[2,10,128], index: 2, kind: input, shape index: {}]
  %s3 = inlined_call_operand.vmem [shape: s32[2,1,128], index: 3, kind: input, shape index: {}]
  %s4 = inlined_call_operand.hbm [shape: f32[2,8,128], index: 4, kind: output, shape index: {}]
  %s5 = sld [smem:[#allocation0]]
  $region49: #{tpu_custom_call.1} parent=0
    _
  %s7 = ssub.s32 1, %s5
  %s8 = scalar_select 0, %s7, %s5
  $region1: #{tpu_custom_call.1} parent=0
    #allocation2 [shape = 'u8[8192]{0}', space=vmem, size = 0x2000, scoped, tag = 'output window, operand 0']
    #allocation3 [shape = 's32[2]{0}', space=sflag, size = 0x8, scoped, tag = 'scoped memory for tpu_custom_call.1']
    %9 = vsyncpa [#allocation3], 0
    %s10 = scalar_lea.sflag [#allocation3], 1
    %11 = vsyncpa %s10, 0
    loop: start=0, step=1, limit=4
    $region2: #{tpu_custom_call.1} parent=1 // loop_pre_header
      _
    $region3: #{tpu_custom_call.1} parent=1 // loop_header
      %s13 = sphi 0, %s17
      %p14 = scmp.ge.s32.totalorder %s13, 4
      %s23 = sphi 0, %s25
      %s26 = sphi 0, %s23
      %s27 = sphi 0, %s26
      %s43 = sphi 0, %s27
      %s49 = sphi 0, %s51
      %s52 = sphi 0, %s49
      %s53 = sphi 0, %s52
      %s69 = sphi 0, %s53
      %s75 = sphi 0, %s77
      %s78 = sphi 0, %s75
      %s79 = sphi 0, %s78
      %s95 = sphi 0, %s79
      %s101 = sphi 0, %s103
      %s104 = sphi 0, %s101
      %s105 = sphi 0, %s104
      %s121 = sphi 0, %s105
      %s127 = sphi 0, %s129
      %s130 = sphi 0, %s127
      %s131 = sphi 0, %s130
      %s147 = sphi 0, %s131
    $region4: #{tpu_custom_call.1} parent=1 // loop_header_branch
      %16 = sbr.rel (%p14) target = $region8
    $region5: #{tpu_custom_call.1} parent=1 // loop_body
      %s18 = ssub.s32 %s13, 1
      %s19 = ssub.s32 %s13, 2
      %s20 = sadd.s32 %s13, 1
      %s21 = ssub.s32 %s13, %s20
      %p22 = scmp.eq.s32.totalorder %s21, 0
      %s24 = sadd.s32 %s23, 1
      %s25 = scalar_select %p22, %s23, %s24
      %p28 = pneg %p22
      %p29 = scmp.eq.s32.totalorder %s13, 1
      %p30 = por %p28, %p29
      %p31 = scmp.ne.s32.totalorder %s23, %s26
      %p32 = scmp.eq.s32.totalorder %s13, 0
      %p33 = por %p31, %p32
      %p34 = scmp.ne.s32.totalorder %s23, %s26
      %p35 = scmp.eq.s32.totalorder %s18, 1
      %p36 = por %p34, %p35
      %p37 = scmp.ne.s32.totalorder %s26, %s27
      %p38 = scmp.eq.s32.totalorder %s18, 0
      %p39 = por %p37, %p38
      %p40 = scmp.ne.s32.totalorder %s26, %s27
      %p41 = scmp.eq.s32.totalorder %s19, 1
      %p42 = por %p40, %p41
      %p44 = scmp.ne.s32.totalorder %s27, %s43
      %p45 = scmp.eq.s32.totalorder %s19, 0
      %p46 = por %p44, %p45
      %s47 = ssub.s32 %s13, %s20
      %p48 = scmp.eq.s32.totalorder %s47, 0
      %s50 = sadd.s32 %s49, 1
      %s51 = scalar_select %p48, %s49, %s50
      %p54 = pneg %p48
      %p55 = scmp.eq.s32.totalorder %s13, 1
      %p56 = por %p54, %p55
      %p57 = scmp.ne.s32.totalorder %s49, %s52
      %p58 = scmp.eq.s32.totalorder %s13, 0
      %p59 = por %p57, %p58
      %p60 = scmp.ne.s32.totalorder %s49, %s52
      %p61 = scmp.eq.s32.totalorder %s18, 1
      %p62 = por %p60, %p61
      %p63 = scmp.ne.s32.totalorder %s52, %s53
      %p64 = scmp.eq.s32.totalorder %s18, 0
      %p65 = por %p63, %p64
      %p66 = scmp.ne.s32.totalorder %s52, %s53
      %p67 = scmp.eq.s32.totalorder %s19, 1
      %p68 = por %p66, %p67
      %p70 = scmp.ne.s32.totalorder %s53, %s69
      %p71 = scmp.eq.s32.totalorder %s19, 0
      %p72 = por %p70, %p71
      %s73 = ssub.s32 %s13, %s20
      %p74 = scmp.eq.s32.totalorder %s73, 0
      %s76 = sadd.s32 %s75, 1
      %s77 = scalar_select %p74, %s75, %s76
      %p80 = pneg %p74
      %p81 = scmp.eq.s32.totalorder %s13, 1
      %p82 = por %p80, %p81
      %p83 = scmp.ne.s32.totalorder %s75, %s78
      %p84 = scmp.eq.s32.totalorder %s13, 0
      %p85 = por %p83, %p84
      %p86 = scmp.ne.s32.totalorder %s75, %s78
      %p87 = scmp.eq.s32.totalorder %s18, 1
      %p88 = por %p86, %p87
      %p89 = scmp.ne.s32.totalorder %s78, %s79
      %p90 = scmp.eq.s32.totalorder %s18, 0
      %p91 = por %p89, %p90
      %p92 = scmp.ne.s32.totalorder %s78, %s79
      %p93 = scmp.eq.s32.totalorder %s19, 1
      %p94 = por %p92, %p93
      %p96 = scmp.ne.s32.totalorder %s79, %s95
      %p97 = scmp.eq.s32.totalorder %s19, 0
      %p98 = por %p96, %p97
      %s99 = ssub.s32 %s13, %s20
      %p100 = scmp.eq.s32.totalorder %s99, 0
      %s102 = sadd.s32 %s101, 1
      %s103 = scalar_select %p100, %s101, %s102
      %p106 = pneg %p100
      %p107 = scmp.eq.s32.totalorder %s13, 1
      %p108 = por %p106, %p107
      %p109 = scmp.ne.s32.totalorder %s101, %s104
      %p110 = scmp.eq.s32.totalorder %s13, 0
      %p111 = por %p109, %p110
      %p112 = scmp.ne.s32.totalorder %s101, %s104
      %p113 = scmp.eq.s32.totalorder %s18, 1
      %p114 = por %p112, %p113
      %p115 = scmp.ne.s32.totalorder %s104, %s105
      %p116 = scmp.eq.s32.totalorder %s18, 0
      %p117 = por %p115, %p116
      %p118 = scmp.ne.s32.totalorder %s104, %s105
      %p119 = scmp.eq.s32.totalorder %s19, 1
      %p120 = por %p118, %p119
      %p122 = scmp.ne.s32.totalorder %s105, %s121
      %p123 = scmp.eq.s32.totalorder %s19, 0
      %p124 = por %p122, %p123
      %s125 = ssub.s32 %s13, %s20
      %p126 = scmp.eq.s32.totalorder %s125, 0
      %s128 = sadd.s32 %s127, 1
      %s129 = scalar_select %p126, %s127, %s128
      %p132 = pneg %p126
      %p133 = scmp.eq.s32.totalorder %s13, 1
      %p134 = por %p132, %p133
      %p135 = scmp.ne.s32.totalorder %s127, %s130
      %p136 = scmp.eq.s32.totalorder %s13, 0
      %p137 = por %p135, %p136
      %p138 = scmp.ne.s32.totalorder %s127, %s130
      %p139 = scmp.eq.s32.totalorder %s18, 1
      %p140 = por %p138, %p139
      %p141 = scmp.ne.s32.totalorder %s130, %s131
      %p142 = scmp.eq.s32.totalorder %s18, 0
      %p143 = por %p141, %p142
      %p144 = scmp.ne.s32.totalorder %s130, %s131
      %p145 = scmp.eq.s32.totalorder %s19, 1
      %p146 = por %p144, %p145
      %p148 = scmp.ne.s32.totalorder %s131, %s147
      %p149 = scmp.eq.s32.totalorder %s19, 0
      %p150 = por %p148, %p149
      %p151 = scmp.le.s32.totalorder 1, %s13
      %p152 = scmp.lt.s32.totalorder %s13, 3
      %p153 = pnand %p151, %p152
      %p154 = pneg %p153
      // Predicated region
      $region9: #{tpu_custom_call.1} parent=5 // pred_check
        _
      $region10: #{tpu_custom_call.1} parent=5 // pred_check_branch
        %156 = sbr.rel (%p153) target = $region12
      $region11: #{tpu_custom_call.1} parent=5 // pred_region
        %s157 = ssub.s32 %s13, 1
      $region12: #{tpu_custom_call.1} parent=5 // pred_fallthru
        _
      %p158 = scmp.lt.s32.totalorder %s13, 2
      // Predicated region
      $region13: #{tpu_custom_call.1} parent=5 // pred_check
        %p159 = pneg %p158
      $region14: #{tpu_custom_call.1} parent=5 // pred_check_branch
        %161 = sbr.rel (%p159) target = $region16
      $region15: #{tpu_custom_call.1} parent=5 // pred_region
        // Predicated region
        $region17: #{tpu_custom_call.1} parent=15 // pred_check
          %p162 = pneg %p33
        $region18: #{tpu_custom_call.1} parent=15 // pred_check_branch
          %164 = sbr.rel (%p162) target = $region20
        $region19: #{tpu_custom_call.1} parent=15 // pred_region
          %p165 = scmp.lt.s32.totalorder %s13, 1
          %s166 = scalar_select %p165, %s13, 1
          %s167 = smul.addr %s166, 8
          %s168 = scalar_lea.vmem %s0, %s167
        $region20: #{tpu_custom_call.1} parent=15 // pred_fallthru
          _
        // Predicated region
        $region21: #{tpu_custom_call.1} parent=15 // pred_check
          %p169 = pneg %p59
        $region22: #{tpu_custom_call.1} parent=15 // pred_check_branch
          %171 = sbr.rel (%p169) target = $region24
        $region23: #{tpu_custom_call.1} parent=15 // pred_region
          %p172 = scmp.lt.s32.totalorder %s13, 1
          %s173 = scalar_select %p172, %s13, 1
          %s174 = smul.addr %s173, 8
          %s175 = scalar_lea.vmem %s1, %s174
        $region24: #{tpu_custom_call.1} parent=15 // pred_fallthru
          _
        // Predicated region
        $region25: #{tpu_custom_call.1} parent=15 // pred_check
          %p176 = pneg %p85
        $region26: #{tpu_custom_call.1} parent=15 // pred_check_branch
          %178 = sbr.rel (%p176) target = $region28
        $region27: #{tpu_custom_call.1} parent=15 // pred_region
          %p179 = scmp.lt.s32.totalorder %s13, 1
          %s180 = scalar_select %p179, %s13, 1
          %s181 = smul.addr %s180, 2
          %s182 = smul.addr %s181, 8
          %s183 = scalar_lea.vmem %s2, %s182
        $region28: #{tpu_custom_call.1} parent=15 // pred_fallthru
          _
        // Predicated region
        $region29: #{tpu_custom_call.1} parent=15 // pred_check
          %p184 = pneg %p111
        $region30: #{tpu_custom_call.1} parent=15 // pred_check_branch
          %186 = sbr.rel (%p184) target = $region32
        $region31: #{tpu_custom_call.1} parent=15 // pred_region
          %p187 = scmp.lt.s32.totalorder %s13, 1
          %s188 = scalar_select %p187, %s13, 1
          %s189 = scalar_lea.vmem %s3, %s188
        $region32: #{tpu_custom_call.1} parent=15 // pred_fallthru
          _
      $region16: #{tpu_custom_call.1} parent=5 // pred_fallthru
        _
      %p190 = scmp.le.s32.totalorder 1, %s13
      %p191 = scmp.lt.s32.totalorder %s13, 3
      %p192 = pnand %p190, %p191
      %p193 = pneg %p192
      // Predicated region
      $region33: #{tpu_custom_call.1} parent=5 // pred_check
        _
      $region34: #{tpu_custom_call.1} parent=5 // pred_check_branch
        %195 = sbr.rel (%p192) target = $region36
      $region35: #{tpu_custom_call.1} parent=5 // pred_region
        %s196 = ssub.s32 %s13, 1
        %p197 = scmp.lt.s32.totalorder %s18, 1
        %s198 = scalar_select %p197, %s18, 1
        %s199 = smul.addr %s198, 8
        %s200 = scalar_lea.vmem %s0, %s199
        %p201 = pneg %p39
        %p202 = pneg %p36
        %p203 = scmp.lt.s32.totalorder %s18, 1
        %s204 = scalar_select %p203, %s18, 1
        %s205 = smul.addr %s204, 8
        %s206 = scalar_lea.vmem %s1, %s205
        %p207 = pneg %p65
        %p208 = pneg %p62
        %p209 = scmp.lt.s32.totalorder %s18, 1
        %s210 = scalar_select %p209, %s18, 1
        %s211 = smul.addr %s210, 2
        %s212 = smul.addr %s211, 8
        %s213 = scalar_lea.vmem %s2, %s212
        %p214 = pneg %p91
        %p215 = pneg %p88
        %p216 = scmp.lt.s32.totalorder %s18, 1
        %s217 = scalar_select %p216, %s18, 1
        %s218 = scalar_lea.vmem %s3, %s217
        %p219 = pneg %p117
        %p220 = pneg %p114
        %p221 = pneg %p143
        %p222 = pneg %p140
        %s223 = sand.u32 %s130, 1
        %s224 = scalar_lea.sflag [#allocation3], %s223
        %s225 = sand.u32 %s130, 1
        %s226 = smul.addr %s225, 8
        %s227 = scalar_lea.vmem [#allocation2], %s226
        %p228 = scmp.lt.s32.totalorder %s18, 1
        %s229 = scalar_select %p228, %s18, 1
        %s230 = smul.addr %s229, 8
        %s231 = scalar_lea.vmem %s0, %s230
        %p232 = scmp.lt.s32.totalorder %s18, 1
        %s233 = scalar_select %p232, %s18, 1
        %s234 = smul.addr %s233, 8
        %s235 = scalar_lea.vmem %s1, %s234
        %p236 = scmp.lt.s32.totalorder %s18, 1
        %s237 = scalar_select %p236, %s18, 1
        %s238 = smul.addr %s237, 2
        %s239 = smul.addr %s238, 8
        %s240 = scalar_lea.vmem %s2, %s239
        %p241 = scmp.lt.s32.totalorder %s18, 1
        %s242 = scalar_select %p241, %s18, 1
        %s243 = scalar_lea.vmem %s3, %s242
        %v244 = vld [vmem:[%s231] sm:$0xff]
        %v245 = vld [vmem:[%s235] sm:$0xff]
        %v246 = vld [vmem:[%s240] sm:$0xff]
        %v247 = vld [vmem:[%s240 + $0x8] sm:$0x3]
        %v248 = vld [vmem:[%s243] sm:$0x1]
        %vm249 = vcmask 23552
        %v250 = vsel %vm249, %v244, -inf
        %251 = vmax.xlane.f32.xlu0 %v250
        %v252 = vpop.xlane.xlu0 %251
        %v253 = vsub.f32 %v244, %v252
        %v254 = vmul.f32 %v253, 1.442695
        %v255 = vpow.pop %v254
        %v256 = vsel %vm249, %v255, 0.0
        %257 = vadd.xlane.f32.xlu0 %v256
        %v258 = vpop.xlane.xlu0 %257
        %v259 = vrcp.pop %v258
        %v260 = vmul.f32 %v255, %v259
        %vm261 = vcmp.eq.s32.totalorder %v248, 0
        %v262 = vsel %vm261, 1, 0
        %v263 = vcvt.s32.f32 %v262
        %265 = vset.pattern.permute.xlu0 0
        %266 = vperm.xlu0 %265, %v260
        %v267 = vpop.permute.xlu0 %266
        %v270 = vlaneseq
        %v271 = vshrl.u32 %v270, 7
        %v272 = vsub.s32 0, %v271
        %v273 = vrot.slane %v263, %v272
        %v275 = vmul.f32 %v267, %v273
        %v276 = vsub.f32 0.0, %v275
        %vm277 = vcmp.eq.s32.totalorder %v248, 1
        %v278 = vsel %vm277, 1, 0
        %v279 = vcvt.s32.f32 %v278
        %280 = vset.pattern.permute.xlu0 1
        %281 = vperm.xlu0 %280, %v260
        %v282 = vpop.permute.xlu0 %281
        %v285 = vlaneseq
        %v286 = vshrl.u32 %v285, 7
        %v287 = vsub.s32 0, %v286
        %v288 = vrot.slane %v279, %v287
        %v290 = vmul.f32 %v282, %v288
        %v291 = vsub.f32 %v276, %v290
        %vm292 = vcmp.eq.s32.totalorder %v248, 2
        %v293 = vsel %vm292, 1, 0
        %v294 = vcvt.s32.f32 %v293
        %295 = vset.pattern.permute.xlu0 2
        %296 = vperm.xlu0 %295, %v260
        %v297 = vpop.permute.xlu0 %296
        %v300 = vlaneseq
        %v301 = vshrl.u32 %v300, 7
        %v302 = vsub.s32 0, %v301
        %v303 = vrot.slane %v294, %v302
        %v305 = vmul.f32 %v297, %v303
        %v306 = vsub.f32 %v291, %v305
        %308 = vset.pattern.permute.xlu0 0
        %309 = vperm.xlu0 %308, %v245
        %v310 = vpop.permute.xlu0 %309
        %v312 = vlaneseq
        %v313 = vshrl.u32 %v312, 7
        %v314 = vsub.s32 0, %v313
        %v315 = vrot.slane %v246, %v314
        %v316 = vsub.f32 %v310, %v315
        %v317 = vand.u32 2147483647, %v316
        %v318 = vadd.f32 %v317, 0.0
        %319 = vset.pattern.permute.xlu0 1
        %320 = vperm.xlu0 %319, %v245
        %v321 = vpop.permute.xlu0 %320
        %v323 = vlaneseq
        %v324 = vshrl.u32 %v323, 7
        %v325 = vsub.s32 1, %v324
        %v326 = vrot.slane %v246, %v325
        %v327 = vsub.f32 %v321, %v326
        %v328 = vand.u32 2147483647, %v327
        %v329 = vadd.f32 %v318, %v328
        %330 = vset.pattern.permute.xlu0 2
        %331 = vperm.xlu0 %330, %v245
        %v332 = vpop.permute.xlu0 %331
        %v334 = vlaneseq
        %v335 = vshrl.u32 %v334, 7
        %v336 = vsub.s32 2, %v335
        %v337 = vrot.slane %v246, %v336
        %v338 = vsub.f32 %v332, %v337
        %v339 = vand.u32 2147483647, %v338
        %v340 = vadd.f32 %v329, %v339
        %341 = vset.pattern.permute.xlu0 3
        %342 = vperm.xlu0 %341, %v245
        %v343 = vpop.permute.xlu0 %342
        %v345 = vlaneseq
        %v346 = vshrl.u32 %v345, 7
        %v347 = vsub.s32 3, %v346
        %v348 = vrot.slane %v246, %v347
        %v349 = vsub.f32 %v343, %v348
        %v350 = vand.u32 2147483647, %v349
        %v351 = vadd.f32 %v340, %v350
        %352 = vset.pattern.permute.xlu0 4
        %353 = vperm.xlu0 %352, %v245
        %v354 = vpop.permute.xlu0 %353
        %v356 = vlaneseq
        %v357 = vshrl.u32 %v356, 7
        %v358 = vsub.s32 4, %v357
        %v359 = vrot.slane %v246, %v358
        %v360 = vsub.f32 %v354, %v359
        %v361 = vand.u32 2147483647, %v360
        %v362 = vadd.f32 %v351, %v361
        %363 = vset.pattern.permute.xlu0 5
        %364 = vperm.xlu0 %363, %v245
        %v365 = vpop.permute.xlu0 %364
        %v367 = vlaneseq
        %v368 = vshrl.u32 %v367, 7
        %v369 = vsub.s32 5, %v368
        %v370 = vrot.slane %v246, %v369
        %v371 = vsub.f32 %v365, %v370
        %v372 = vand.u32 2147483647, %v371
        %v373 = vadd.f32 %v362, %v372
        %374 = vset.pattern.permute.xlu0 6
        %375 = vperm.xlu0 %374, %v245
        %v376 = vpop.permute.xlu0 %375
        %v378 = vlaneseq
        %v379 = vshrl.u32 %v378, 7
        %v380 = vsub.s32 6, %v379
        %v381 = vrot.slane %v246, %v380
        %v382 = vsub.f32 %v376, %v381
        %v383 = vand.u32 2147483647, %v382
        %v384 = vadd.f32 %v373, %v383
        %385 = vset.pattern.permute.xlu0 7
        %386 = vperm.xlu0 %385, %v245
        %v387 = vpop.permute.xlu0 %386
        %v389 = vlaneseq
        %v390 = vshrl.u32 %v389, 7
        %v391 = vsub.s32 7, %v390
        %v392 = vrot.slane %v246, %v391
        %v393 = vsub.f32 %v387, %v392
        %v394 = vand.u32 2147483647, %v393
        %v395 = vadd.f32 %v384, %v394
        %396 = vset.pattern.permute.xlu0 8
        %397 = vperm.xlu0 %396, %v245
        %v398 = vpop.permute.xlu0 %397
        %v400 = vlaneseq
        %v401 = vshrl.u32 %v400, 7
        %v402 = vsub.s32 0, %v401
        %v403 = vrot.slane %v247, %v402
        %v404 = vsub.f32 %v398, %v403
        %v405 = vand.u32 2147483647, %v404
        %v406 = vadd.f32 %v395, %v405
        %407 = vset.pattern.permute.xlu0 9
        %408 = vperm.xlu0 %407, %v245
        %v409 = vpop.permute.xlu0 %408
        %v411 = vlaneseq
        %v412 = vshrl.u32 %v411, 7
        %v413 = vsub.s32 1, %v412
        %v414 = vrot.slane %v247, %v413
        %v415 = vsub.f32 %v409, %v414
        %v416 = vand.u32 2147483647, %v415
        %v417 = vadd.f32 %v406, %v416
        %v418 = vadd.f32 %v417, %v306
        %419 = vst [vmem:[%s227] sm:$0xff] %v418
        %s420 = sand.u32 %s130, 1
        %s421 = scalar_lea.sflag [#allocation3], %s420
        %s422 = sand.u32 %s130, 1
        %s423 = smul.addr %s422, 8
        %s424 = scalar_lea.vmem [#allocation2], %s423
        // Predicated region
        $region37: #{tpu_custom_call.1} parent=35 // pred_check
          %p425 = pneg %p140
        $region38: #{tpu_custom_call.1} parent=35 // pred_check_branch
          %427 = sbr.rel (%p425) target = $region40
        $region39: #{tpu_custom_call.1} parent=35 // pred_region
          %s429 = ssub.s32 128, 128
          %430 = vsyncadd %s421, %s429
          %s431 = smul.addr %s18, 128
          %s432 = scalar_lea.hbm %s4, %s431
          %s434 = sshll.u32 %s424, 4
          %s435 = int_to_ptr.vmem [resolvable:$true] %s434
          %437 = dma.vmem_to_hbm [thread:$0]  %s435, 128, %s432, %s421
        $region40: #{tpu_custom_call.1} parent=35 // pred_fallthru
          _
      $region36: #{tpu_custom_call.1} parent=5 // pred_fallthru
        _
      %p438 = scmp.le.s32.totalorder 2, %s13
      // Predicated region
      $region41: #{tpu_custom_call.1} parent=5 // pred_check
        %p439 = pneg %p438
      $region42: #{tpu_custom_call.1} parent=5 // pred_check_branch
        %441 = sbr.rel (%p439) target = $region44
      $region43: #{tpu_custom_call.1} parent=5 // pred_region
        %s442 = ssub.s32 %s13, 2
        // Predicated region
        $region45: #{tpu_custom_call.1} parent=43 // pred_check
          %p443 = pneg %p146
        $region46: #{tpu_custom_call.1} parent=43 // pred_check_branch
          %445 = sbr.rel (%p443) target = $region48
        $region47: #{tpu_custom_call.1} parent=43 // pred_region
          %s446 = sand.u32 %s131, 1
          %s447 = scalar_lea.sflag [#allocation3], %s446
          %s448 = sand.u32 %s131, 1
          %s449 = smul.addr %s448, 8
          %s450 = scalar_lea.vmem [#allocation2], %s449
          %451 = dma.done %s447, 128
        $region48: #{tpu_custom_call.1} parent=43 // pred_fallthru
          _
      $region44: #{tpu_custom_call.1} parent=5 // pred_fallthru
        _
    $region6: #{tpu_custom_call.1} parent=1 // loop_footer
      %s17 = sadd.s32 1, %s13
    $region7: #{tpu_custom_call.1} parent=1 // loop_footer_branch
      %12 = sbr.rel target = $region3
    $region8: #{tpu_custom_call.1} parent=1 // loop_exit
      _
    %452 = vsyncpa [#allocation3], 1
    %s453 = scalar_lea.sflag [#allocation3], 1
    %454 = vsyncpa %s453, 1

</llo_original>
